<compile_context>
chip_gen: v7x
topology: tpu7x:2x2x1
jax: 0.10.0
libtpu: 0.0.40
codegen_flags: <defaults>
</compile_context>

<pallas_src>
import math
from functools import partial

import jax
import jax.numpy as jnp
from jax.experimental import pallas as pl
from jax.experimental.pallas import tpu as pltpu

BN_EPS = 1e-5
LANE = 128
VMEM_LIMIT = 32 * 1024 * 1024  # safe on v5e/v6e (128 MiB) and v7x (64 MiB)


# ---------------------------------------------------------------------------
# Small helpers
# ---------------------------------------------------------------------------
def _round_up(x, m):
    return (x + m - 1) // m * m


def _pad_last(a, target):
    d = target - a.shape[-1]
    if d <= 0:
        return a
    return jnp.pad(a, [(0, 0)] * (a.ndim - 1) + [(0, d)])


def _pick_tile(m, cap=256):
    """Largest divisor of m that is <= cap and a multiple of 8 (else m)."""
    if m <= cap:
        return m
    t = cap
    while t >= 8:
        if m % t == 0 and t % 8 == 0:
            return t
        t -= 8
    return m


# ---------------------------------------------------------------------------
# Kernel 1: tiled matmul + bias (+ ReLU)  —  backbone convs via im2col
# ---------------------------------------------------------------------------
def _matmul_bias_act_kernel(x_ref, w_ref, b_ref, o_ref, *, relu):
    """x: (TILE_M, K) bf16, w: (K, CoutP) bf16, b: (1, CoutP) f32 -> bf16 out."""
    y = jnp.dot(x_ref[...], w_ref[...], preferred_element_type=jnp.float32)
    y = y + b_ref[...]
    if relu:
        y = jnp.maximum(y, 0.0)
    o_ref[...] = y.astype(o_ref.dtype)


def _im2col(x, k, stride, pad):
    """x: (N, H, W, C) -> ((N*Ho*Wo, k*k*C), N, Ho, Wo); tap-major, channel-minor."""
    N, H, W, C = x.shape
    if pad:
        x = jnp.pad(x, ((0, 0), (pad, pad), (pad, pad), (0, 0)))
    Ho = (H + 2 * pad - k) // stride + 1
    Wo = (W + 2 * pad - k) // stride + 1
    cols = []
    for ky in range(k):
        for kx in range(k):
            cols.append(
                x[:, ky:ky + stride * (Ho - 1) + 1:stride,
                     kx:kx + stride * (Wo - 1) + 1:stride, :])
    patches = jnp.concatenate(cols, axis=-1) if len(cols) > 1 else cols[0]
    return patches.reshape(N * Ho * Wo, k * k * C), N, Ho, Wo


def _weight_matrix(w_oihw, k_pad, cout_p):
    """(Cout, Cin, kh, kw) -> (k_pad, cout_p) bf16, matching _im2col ordering."""
    cout, cin, kh, kw = w_oihw.shape
    wm = jnp.transpose(w_oihw, (2, 3, 1, 0)).reshape(kh * kw * cin, cout)
    wm = jnp.pad(wm, ((0, k_pad - kh * kw * cin), (0, cout_p - cout)))
    return wm.astype(jnp.bfloat16)


def conv2d_bias_act(x, w, b, *, stride, pad, relu, keep_padded=False):
    """NHWC conv as an M-tiled, lane-dense, bf16 matmul Pallas kernel."""
    cout, _cin, k, _ = w.shape
    patches, N, Ho, Wo = _im2col(x, k, stride, pad)
    K = patches.shape[1]
    K8 = _round_up(K, 8)
    if K8 != K:
        patches = jnp.pad(patches, ((0, 0), (0, K8 - K)))
    patches = patches.astype(jnp.bfloat16)
    cout_p = _round_up(cout, LANE)
    wm = _weight_matrix(w, K8, cout_p)
    b2 = _pad_last(b.reshape(1, cout).astype(jnp.float32), cout_p)

    M = patches.shape[0]
    tile_m = _pick_tile(M)
    out = pl.pallas_call(
        partial(_matmul_bias_act_kernel, relu=relu),
        out_shape=jax.ShapeDtypeStruct((M, cout_p), jnp.bfloat16),
        grid=(M // tile_m,),
        in_specs=[
            pl.BlockSpec((tile_m, K8), lambda i: (i, 0)),
            pl.BlockSpec((K8, cout_p), lambda i: (0, 0)),
            pl.BlockSpec((1, cout_p), lambda i: (0, 0)),
        ],
        out_specs=pl.BlockSpec((tile_m, cout_p), lambda i: (i, 0)),
        compiler_params=pltpu.CompilerParams(
            dimension_semantics=("parallel",),
            vmem_limit_bytes=VMEM_LIMIT),
    )(patches, wm, b2)

    out = out.reshape(N, Ho, Wo, cout_p)
    return out if keep_padded else out[..., :cout]


# ---------------------------------------------------------------------------
# Kernel 2: fused FPN top level + whole head (+ global average pool)
# ---------------------------------------------------------------------------
def _make_tail_kernel(n_hidden):
    def kernel(*args):
        x_ref, wl_ref, bl_ref, wf_ref, bf_ref = args[:5]
        hid = args[5:5 + 3 * n_hidden]
        w3_ref, b3_ref, pool_ref, o_ref, pad_ref = args[5 + 3 * n_hidden:]

        n, h, w, cp = x_ref.shape
        rows = n * h * w

        def write_padded(vals_f32):
            pad_ref[:, 1:h + 1, 1:w + 1, :] = (
                vals_f32.reshape(n, h, w, cp).astype(pad_ref.dtype))

        def conv3x3(w_taps_ref):
            acc = jnp.zeros((rows, cp), jnp.float32)
            for dy in range(3):
                for dx in range(3):
                    win = pad_ref[:, dy:dy + h, dx:dx + w, :].reshape(rows, cp)
                    acc = acc + jnp.dot(win, w_taps_ref[dy * 3 + dx],
                                        preferred_element_type=jnp.float32)
            return acc

        def bn_relu(y, g_ref, bt_ref):
            # nn.BatchNorm2d training-mode batch stats; exact because the whole
            # batch is resident in this single fused invocation.
            mean = jnp.mean(y, axis=0, keepdims=True)
            var = jnp.mean(jnp.square(y - mean), axis=0, keepdims=True)
            yn = (y - mean) * jax.lax.rsqrt(var + BN_EPS)
            return jnp.maximum(yn * g_ref[...] + bt_ref[...], 0.0)

        # Zero once: halo border stays 0; interiors are overwritten per layer.
        pad_ref[...] = jnp.zeros_like(pad_ref)

        # FPN top level: lateral 1x1 conv, then 3x3 output conv.
        x_flat = x_ref[...].reshape(rows, cp)
        cur = jnp.dot(x_flat, wl_ref[...],
                      preferred_element_type=jnp.float32) + bl_ref[...]
        write_padded(cur)
        cur = conv3x3(wf_ref) + bf_ref[...]

        # Head hidden layers: conv3x3 -> BN -> ReLU. Conv bias is skipped: it
        # is cancelled exactly by the BN mean subtraction.
        for li in range(n_hidden):
            w_r, g_r, bt_r = hid[3 * li:3 * li + 3]
            write_padded(cur)
            cur = bn_relu(conv3x3(w_r), g_r, bt_r)

        # Final conv3x3 + adaptive_avg_pool2d((1,1)) + flatten; pool done as a
        # matmul against a per-image averaging matrix (MXU, lane-dense output).
        write_padded(cur)
        cur = conv3x3(w3_ref) + b3_ref[...]
        o_ref[...] = jnp.dot(pool_ref[...], cur,
                             preferred_element_type=jnp.float32)
    return kernel


def _taps_3x3(w_oihw, cp):
    cout, cin, kh, kw = w_oihw.shape
    t = jnp.transpose(w_oihw, (2, 3, 1, 0)).reshape(kh * kw, cin, cout)
    t = jnp.pad(t, ((0, 0), (0, cp - cin), (0, cp - cout)))
    return t.astype(jnp.bfloat16)


def _mat_1x1(w_oihw, cp):
    cout, cin = w_oihw.shape[:2]
    m = jnp.transpose(w_oihw[:, :, 0, 0], (1, 0))
    m = jnp.pad(m, ((0, cp - cin), (0, cp - cout)))
    return m.astype(jnp.bfloat16)


def _vec(v, cp):
    return _pad_last(v.astype(jnp.float32).reshape(1, -1), cp)


def _fpn_and_head(feat, params):
    wl_o, bl_o = params["fpn_inner"]
    wf_o, bf_o = params["fpn_layer"]
    hidden = params["head_hidden"]
    w3_o, b3_o = params["head_last"]
    out_features = w3_o.shape[0]

    chans = [wl_o.shape[1], wl_o.shape[0], wf_o.shape[0], w3_o.shape[0]]
    chans += [w.shape[0] for (w, _b, _g, _bt) in hidden]
    cp = _round_up(max(chans), LANE)

    N, H, W, _ = feat.shape
    feat = _pad_last(feat, cp).astype(jnp.bfloat16)

    inputs = [feat,
              _mat_1x1(wl_o, cp), _vec(bl_o, cp),
              _taps_3x3(wf_o, cp), _vec(bf_o, cp)]
    for (w, _b, g, bt) in hidden:  # conv bias unused under training-mode BN
        inputs += [_taps_3x3(w, cp), _vec(g, cp), _vec(bt, cp)]
    pool = jnp.repeat(jnp.eye(N, dtype=jnp.float32), H * W, axis=1) / float(H * W)
    inputs += [_taps_3x3(w3_o, cp), _vec(b3_o, cp), pool]

    out = pl.pallas_call(
        _make_tail_kernel(len(hidden)),
        out_shape=jax.ShapeDtypeStruct((N, cp), jnp.float32),
        in_specs=[pl.BlockSpec(memory_space=pltpu.MemorySpace.VMEM)] * len(inputs),
        out_specs=pl.BlockSpec(memory_space=pltpu.MemorySpace.VMEM),
        scratch_shapes=[pltpu.VMEM((N, H + 2, W + 2, cp), jnp.bfloat16)],
        compiler_params=pltpu.CompilerParams(vmem_limit_bytes=VMEM_LIMIT),
    )(*inputs)
    return out[:, :out_features]


# ---------------------------------------------------------------------------
# BackbonedFPN forward
# ---------------------------------------------------------------------------
def backboned_fpn_forward(x_nchw, params):
    # PyTorch conv input is NCHW; kernels use NHWC (channels on lanes).
    x = jnp.transpose(x_nchw, (0, 2, 3, 1))

    # Synthetic backbone: stride-2 conv3x3 + ReLU stages (multi-scale features);
    # only the coarsest (last) feature feeds the FPN/head path, as in the module.
    feat = x
    n_bk = len(params["backbone"])
    for li, (w, b) in enumerate(params["backbone"]):
        feat = conv2d_bias_act(feat, w, b, stride=2, pad=1, relu=True,
                               keep_padded=(li == n_bk - 1))

    # FPN top level + whole head fused into one VMEM-resident pallas_call.
    return _fpn_and_head(feat, params)


# ---------------------------------------------------------------------------
# Deterministic parameter init (PyTorch-style kaiming-uniform bounds)
# ---------------------------------------------------------------------------
def conv_params(key, cout, cin, k):
    kw, kb = jax.random.split(key)
    bound = 1.0 / math.sqrt(cin * k * k)
    w = jax.random.uniform(kw, (cout, cin, k, k), jnp.float32, -bound, bound)
    b = jax.random.uniform(kb, (cout,), jnp.float32, -bound, bound)
    return w, b


if __name__ == "__main__":
    key = jax.random.PRNGKey(0)
    keys = jax.random.split(key, 16)

    N, Cin, H, W = 2, 3, 32, 32
    x = jax.random.normal(keys[0], (N, Cin, H, W), jnp.float32)

    fpn_channels = 32
    output_features = 10
    head_layers = 3
    backbone_channels = [8, 16, 32]

    params = {}
    bk, cprev = [], Cin
    for i, c in enumerate(backbone_channels):
        bk.append(conv_params(keys[1 + i], c, cprev, 3))
        cprev = c
    params["backbone"] = bk

    params["fpn_inner"] = conv_params(keys[5], fpn_channels, backbone_channels[-1], 1)
    params["fpn_layer"] = conv_params(keys[6], fpn_channels, fpn_channels, 3)

    head_hidden, in_c = [], fpn_channels
    for i in range(head_layers - 1):
        out_c = int(fpn_channels * 2 ** (-i - 1))
        w, b = conv_params(keys[7 + i], out_c, in_c, 3)
        gamma = jnp.ones((out_c,), jnp.float32)   # PyTorch BatchNorm2d default init
        beta = jnp.zeros((out_c,), jnp.float32)
        head_hidden.append((w, b, gamma, beta))
        in_c = out_c
    params["head_hidden"] = head_hidden
    params["head_last"] = conv_params(keys[10], output_features, in_c, 3)

    out = backboned_fpn_forward(x, params)
    jax.block_until_ready(out)
    assert out.shape == (N, output_features), out.shape
    assert out.dtype == jnp.float32
    print("KERNEL_OK")
</pallas_src>

<mosaic_0001>
module attributes {stable_mosaic.version = 11 : i64} {
  func.func @_matmul_bias_act_kernel(%arg0: i32, %arg1: memref<256x32xbf16, #tpu.memory_space<vmem>>, %arg2: memref<32x128xbf16, #tpu.memory_space<vmem>>, %arg3: memref<1x128xf32, #tpu.memory_space<vmem>>, %arg4: memref<256x128xbf16, #tpu.memory_space<vmem>>) attributes {dimension_semantics = [#tpu.dimension_semantics<parallel>], iteration_bounds = array<i64: 2>, scalar_prefetch = 0 : i64, scratch_operands = 0 : i64, tpu.core_type = #tpu.core_type<tc>, window_params = [{transform_indices = @transform_0, window_bounds = array<i64: 256, 32>}, {pipeline_mode = #tpu.pipeline_mode<synchronous>, transform_indices = @transform_1, window_bounds = array<i64: 32, 128>}, {pipeline_mode = #tpu.pipeline_mode<synchronous>, transform_indices = @transform_2, window_bounds = array<i64: 1, 128>}, {transform_indices = @transform_3, window_bounds = array<i64: 256, 128>}]} {
    %c0 = arith.constant 0 : index
    %c0_0 = arith.constant 0 : index
    %0 = vector.load %arg1[%c0, %c0_0] : memref<256x32xbf16, #tpu.memory_space<vmem>>, vector<256x32xbf16>
    %c0_1 = arith.constant 0 : index
    %c0_2 = arith.constant 0 : index
    %1 = vector.load %arg2[%c0_1, %c0_2] : memref<32x128xbf16, #tpu.memory_space<vmem>>, vector<32x128xbf16>
    %cst = arith.constant dense<0.000000e+00> : vector<256x128xf32>
    %2 = tpu.matmul %0, %1, %cst {dimension_numbers = #tpu.dot_dimension_numbers<[1], [0], [0], [1], [0, 0, 1, 1], [], []>} : vector<256x32xbf16>, vector<32x128xbf16>, vector<256x128xf32> -> vector<256x128xf32>
    %c0_3 = arith.constant 0 : index
    %c0_4 = arith.constant 0 : index
    %3 = vector.load %arg3[%c0_3, %c0_4] : memref<1x128xf32, #tpu.memory_space<vmem>>, vector<1x128xf32>
    %4 = vector.broadcast %3 : vector<1x128xf32> to vector<256x128xf32>
    %5 = arith.addf %2, %4 : vector<256x128xf32>
    %cst_5 = arith.constant 0.000000e+00 : f32
    %6 = vector.broadcast %cst_5 : f32 to vector<256x128xf32>
    %7 = arith.maximumf %5, %6 : vector<256x128xf32>
    %8 = arith.truncf %7 : vector<256x128xf32> to vector<256x128xbf16>
    %c0_6 = arith.constant 0 : index
    %c0_7 = arith.constant 0 : index
    %9 = vector.load %arg4[%c0_6, %c0_7] : memref<256x128xbf16, #tpu.memory_space<vmem>>, vector<256x128xbf16>
    tpu.vector_store %arg4[%c0_6, %c0_7], %8 {strides = array<i32>} : memref<256x128xbf16, #tpu.memory_space<vmem>>, vector<256x128xbf16>,
    return
  }
  func.func @transform_0(%arg0: i32) -> (i32, i32) {
    %c0_i32 = arith.constant 0 : i32
    %c0_i32_0 = arith.constant 0 : i32
    return %arg0, %c0_i32 : i32, i32
  }
  func.func @transform_1(%arg0: i32) -> (i32, i32) {
    %c0_i32 = arith.constant 0 : i32
    %c0_i32_0 = arith.constant 0 : i32
    %c0_i32_1 = arith.constant 0 : i32
    return %c0_i32, %c0_i32_0 : i32, i32
  }
  func.func @transform_2(%arg0: i32) -> (i32, i32) {
    %c0_i32 = arith.constant 0 : i32
    %c0_i32_0 = arith.constant 0 : i32
    %c0_i32_1 = arith.constant 0 : i32
    return %c0_i32, %c0_i32_0 : i32, i32
  }
  func.func @transform_3(%arg0: i32) -> (i32, i32) {
    %c0_i32 = arith.constant 0 : i32
    %c0_i32_0 = arith.constant 0 : i32
    return %arg0, %c0_i32 : i32, i32
  }
}

</mosaic_0001>

<llo_original>
// kernel: tpu_custom_call.1
$region0: #{tpu_custom_call.1}
  #allocation0 [shape = 'u32[]', space=smem, size = 0x4, offset = 0x4, fixed_abs, tag = 'smem constant byte address 0x4 - core index']
  #allocation1 [shape = 'u32[144,128]{1,0:T(1,128)}', space=vmem, size = 0x12000, scoped, tag = 'internal scratch']
  %s0 = inlined_call_operand.vmem [shape: bf16[512,32], index: 0, kind: input, shape index: {}]
  %s1 = inlined_call_operand.vmem [shape: bf16[32,128], index: 1, kind: input, shape index: {}]
  %s2 = inlined_call_operand.vmem [shape: f32[1,128], index: 2, kind: input, shape index: {}]
  %s3 = inlined_call_operand.hbm [shape: bf16[512,128], index: 3, kind: output, shape index: {}]
  %s4 = sld [smem:[#allocation0]]
  $region45: #{tpu_custom_call.1} parent=0
    _
  %s6 = ssub.s32 1, %s4
  %s7 = scalar_select 0, %s6, %s4
  $region1: #{tpu_custom_call.1} parent=0
    #allocation2 [shape = 'u8[131072]{0}', space=vmem, size = 0x20000, scoped, tag = 'output window, operand 0']
    #allocation3 [shape = 's32[2]{0}', space=sflag, size = 0x8, scoped, tag = 'scoped memory for tpu_custom_call.1']
    %8 = vsyncpa [#allocation3], 0
    %s9 = scalar_lea.sflag [#allocation3], 1
    %10 = vsyncpa %s9, 0
    loop: start=0, step=1, limit=4
    $region2: #{tpu_custom_call.1} parent=1 // loop_pre_header
      _
    $region3: #{tpu_custom_call.1} parent=1 // loop_header
      %s12 = sphi 0, %s16
      %p13 = scmp.ge.s32.totalorder %s12, 4
      %s22 = sphi 0, %s24
      %s25 = sphi 0, %s22
      %s26 = sphi 0, %s25
      %s42 = sphi 0, %s26
      %s46 = sphi 0, %s46
      %s48 = sphi 0, %s46
      %s49 = sphi 0, %s48
      %s63 = sphi 0, %s49
      %s67 = sphi 0, %s67
      %s69 = sphi 0, %s67
      %s70 = sphi 0, %s69
      %s84 = sphi 0, %s70
      %s90 = sphi 0, %s92
      %s93 = sphi 0, %s90
      %s94 = sphi 0, %s93
      %s110 = sphi 0, %s94
    $region4: #{tpu_custom_call.1} parent=1 // loop_header_branch
      %15 = sbr.rel (%p13) target = $region8
    $region5: #{tpu_custom_call.1} parent=1 // loop_body
      %s17 = ssub.s32 %s12, 1
      %s18 = ssub.s32 %s12, 2
      %s19 = sadd.s32 %s12, 1
      %s20 = ssub.s32 %s12, %s19
      %p21 = scmp.eq.s32.totalorder %s20, 0
      %s23 = sadd.s32 %s22, 1
      %s24 = scalar_select %p21, %s22, %s23
      %p27 = pneg %p21
      %p28 = scmp.eq.s32.totalorder %s12, 1
      %p29 = por %p27, %p28
      %p30 = scmp.ne.s32.totalorder %s22, %s25
      %p31 = scmp.eq.s32.totalorder %s12, 0
      %p32 = por %p30, %p31
      %p33 = scmp.ne.s32.totalorder %s22, %s25
      %p34 = scmp.eq.s32.totalorder %s17, 1
      %p35 = por %p33, %p34
      %p36 = scmp.ne.s32.totalorder %s25, %s26
      %p37 = scmp.eq.s32.totalorder %s17, 0
      %p38 = por %p36, %p37
      %p39 = scmp.ne.s32.totalorder %s25, %s26
      %p40 = scmp.eq.s32.totalorder %s18, 1
      %p41 = por %p39, %p40
      %p43 = scmp.ne.s32.totalorder %s26, %s42
      %p44 = scmp.eq.s32.totalorder %s18, 0
      %p45 = por %p43, %p44
      %s47 = sadd.s32 %s46, 1
      %p50 = scmp.eq.s32.totalorder %s12, 1
      %p51 = scmp.ne.s32.totalorder %s46, %s48
      %p52 = scmp.eq.s32.totalorder %s12, 0
      %p53 = por %p51, %p52
      %p54 = scmp.ne.s32.totalorder %s46, %s48
      %p55 = scmp.eq.s32.totalorder %s17, 1
      %p56 = por %p54, %p55
      %p57 = scmp.ne.s32.totalorder %s48, %s49
      %p58 = scmp.eq.s32.totalorder %s17, 0
      %p59 = por %p57, %p58
      %p60 = scmp.ne.s32.totalorder %s48, %s49
      %p61 = scmp.eq.s32.totalorder %s18, 1
      %p62 = por %p60, %p61
      %p64 = scmp.ne.s32.totalorder %s49, %s63
      %p65 = scmp.eq.s32.totalorder %s18, 0
      %p66 = por %p64, %p65
      %s68 = sadd.s32 %s67, 1
      %p71 = scmp.eq.s32.totalorder %s12, 1
      %p72 = scmp.ne.s32.totalorder %s67, %s69
      %p73 = scmp.eq.s32.totalorder %s12, 0
      %p74 = por %p72, %p73
      %p75 = scmp.ne.s32.totalorder %s67, %s69
      %p76 = scmp.eq.s32.totalorder %s17, 1
      %p77 = por %p75, %p76
      %p78 = scmp.ne.s32.totalorder %s69, %s70
      %p79 = scmp.eq.s32.totalorder %s17, 0
      %p80 = por %p78, %p79
      %p81 = scmp.ne.s32.totalorder %s69, %s70
      %p82 = scmp.eq.s32.totalorder %s18, 1
      %p83 = por %p81, %p82
      %p85 = scmp.ne.s32.totalorder %s70, %s84
      %p86 = scmp.eq.s32.totalorder %s18, 0
      %p87 = por %p85, %p86
      %s88 = ssub.s32 %s12, %s19
      %p89 = scmp.eq.s32.totalorder %s88, 0
      %s91 = sadd.s32 %s90, 1
      %s92 = scalar_select %p89, %s90, %s91
      %p95 = pneg %p89
      %p96 = scmp.eq.s32.totalorder %s12, 1
      %p97 = por %p95, %p96
      %p98 = scmp.ne.s32.totalorder %s90, %s93
      %p99 = scmp.eq.s32.totalorder %s12, 0
      %p100 = por %p98, %p99
      %p101 = scmp.ne.s32.totalorder %s90, %s93
      %p102 = scmp.eq.s32.totalorder %s17, 1
      %p103 = por %p101, %p102
      %p104 = scmp.ne.s32.totalorder %s93, %s94
      %p105 = scmp.eq.s32.totalorder %s17, 0
      %p106 = por %p104, %p105
      %p107 = scmp.ne.s32.totalorder %s93, %s94
      %p108 = scmp.eq.s32.totalorder %s18, 1
      %p109 = por %p107, %p108
      %p111 = scmp.ne.s32.totalorder %s94, %s110
      %p112 = scmp.eq.s32.totalorder %s18, 0
      %p113 = por %p111, %p112
      %p114 = scmp.le.s32.totalorder 1, %s12
      %p115 = scmp.lt.s32.totalorder %s12, 3
      %p116 = pnand %p114, %p115
      %p117 = pneg %p116
      // Predicated region
      $region9: #{tpu_custom_call.1} parent=5 // pred_check
        _
      $region10: #{tpu_custom_call.1} parent=5 // pred_check_branch
        %119 = sbr.rel (%p116) target = $region12
      $region11: #{tpu_custom_call.1} parent=5 // pred_region
        %s120 = ssub.s32 %s12, 1
        // Predicated region
        $region13: #{tpu_custom_call.1} parent=11 // pred_check
          %p121 = pneg %p59
        $region14: #{tpu_custom_call.1} parent=11 // pred_check_branch
          %123 = sbr.rel (%p121) target = $region16
        $region15: #{tpu_custom_call.1} parent=11 // pred_region
          _
        $region16: #{tpu_custom_call.1} parent=11 // pred_fallthru
          _
        // Predicated region
        $region17: #{tpu_custom_call.1} parent=11 // pred_check
          %p124 = pneg %p80
        $region18: #{tpu_custom_call.1} parent=11 // pred_check_branch
          %126 = sbr.rel (%p124) target = $region20
        $region19: #{tpu_custom_call.1} parent=11 // pred_region
          _
        $region20: #{tpu_custom_call.1} parent=11 // pred_fallthru
          _
      $region12: #{tpu_custom_call.1} parent=5 // pred_fallthru
        _
      %p127 = scmp.lt.s32.totalorder %s12, 2
      // Predicated region
      $region21: #{tpu_custom_call.1} parent=5 // pred_check
        %p128 = pneg %p127
      $region22: #{tpu_custom_call.1} parent=5 // pred_check_branch
        %130 = sbr.rel (%p128) target = $region24
      $region23: #{tpu_custom_call.1} parent=5 // pred_region
        // Predicated region
        $region25: #{tpu_custom_call.1} parent=23 // pred_check
          %p131 = pneg %p32
        $region26: #{tpu_custom_call.1} parent=23 // pred_check_branch
          %133 = sbr.rel (%p131) target = $region28
        $region27: #{tpu_custom_call.1} parent=23 // pred_region
          %s134 = smul.u32 32, %s12
          %p135 = scmp.lt.s32.totalorder %s134, 63
          %s136 = scalar_select %p135, %s134, 63
          %s137 = smul.addr %s136, 4
          %s138 = scalar_lea.vmem %s0, %s137
          %s139 = smul.u32 32, %s12
        $region28: #{tpu_custom_call.1} parent=23 // pred_fallthru
          _
      $region24: #{tpu_custom_call.1} parent=5 // pred_fallthru
        _
      %p140 = scmp.le.s32.totalorder 1, %s12
      %p141 = scmp.lt.s32.totalorder %s12, 3
      %p142 = pnand %p140, %p141
      %p143 = pneg %p142
      // Predicated region
      $region29: #{tpu_custom_call.1} parent=5 // pred_check
        _
      $region30: #{tpu_custom_call.1} parent=5 // pred_check_branch
        %145 = sbr.rel (%p142) target = $region32
      $region31: #{tpu_custom_call.1} parent=5 // pred_region
        %s146 = ssub.s32 %s12, 1
        %s147 = smul.u32 32, %s17
        %p148 = scmp.lt.s32.totalorder %s147, 63
        %s149 = scalar_select %p148, %s147, 63
        %s150 = smul.addr %s149, 4
        %s151 = scalar_lea.vmem %s0, %s150
        %p152 = pneg %p38
        %p153 = pneg %p35
        %p154 = pneg %p59
        %p155 = pneg %p56
        %p156 = pneg %p80
        %p157 = pneg %p77
        %p158 = pneg %p106
        %p159 = pneg %p103
        %s160 = sand.u32 %s93, 1
        %s161 = scalar_lea.sflag [#allocation3], %s160
        %s162 = sand.u32 %s93, 1
        %s163 = smul.addr %s162, 128
        %s164 = scalar_lea.vmem [#allocation2], %s163
        %s165 = smul.u32 32, %s17
        %p166 = scmp.lt.s32.totalorder %s165, 63
        %s167 = scalar_select %p166, %s165, 63
        %s168 = smul.addr %s167, 4
        %s169 = scalar_lea.vmem %s0, %s168
        %s170 = smul.u32 32, %s17
        %s171 = smul.u32 32, %s17
        %v173 = vld [vmem:[%s169] sm:$0xf]
        %v174 = vld [vmem:[%s169 + $0x4] sm:$0xf]
        %v175 = vld [vmem:[%s169 + $0x8] sm:$0xf]
        %v176 = vld [vmem:[%s169 + $0xc] sm:$0xf]
        %v177 = vld [vmem:[%s169 + $0x10] sm:$0xf]
        %v178 = vld [vmem:[%s169 + $0x14] sm:$0xf]
        %v179 = vld [vmem:[%s169 + $0x18] sm:$0xf]
        %v180 = vld [vmem:[%s169 + $0x1c] sm:$0xf]
        %v181 = vld [vmem:[%s169 + $0x20] sm:$0xf]
        %v182 = vld [vmem:[%s169 + $0x24] sm:$0xf]
        %v183 = vld [vmem:[%s169 + $0x28] sm:$0xf]
        %v184 = vld [vmem:[%s169 + $0x2c] sm:$0xf]
        %v185 = vld [vmem:[%s169 + $0x30] sm:$0xf]
        %v186 = vld [vmem:[%s169 + $0x34] sm:$0xf]
        %v187 = vld [vmem:[%s169 + $0x38] sm:$0xf]
        %v188 = vld [vmem:[%s169 + $0x3c] sm:$0xf]
        %v189 = vld [vmem:[%s169 + $0x40] sm:$0xf]
        %v190 = vld [vmem:[%s169 + $0x44] sm:$0xf]
        %v191 = vld [vmem:[%s169 + $0x48] sm:$0xf]
        %v192 = vld [vmem:[%s169 + $0x4c] sm:$0xf]
        %v193 = vld [vmem:[%s169 + $0x50] sm:$0xf]
        %v194 = vld [vmem:[%s169 + $0x54] sm:$0xf]
        %v195 = vld [vmem:[%s169 + $0x58] sm:$0xf]
        %v196 = vld [vmem:[%s169 + $0x5c] sm:$0xf]
        %v197 = vld [vmem:[%s169 + $0x60] sm:$0xf]
        %v198 = vld [vmem:[%s169 + $0x64] sm:$0xf]
        %v199 = vld [vmem:[%s169 + $0x68] sm:$0xf]
        %v200 = vld [vmem:[%s169 + $0x6c] sm:$0xf]
        %v201 = vld [vmem:[%s169 + $0x70] sm:$0xf]
        %v202 = vld [vmem:[%s169 + $0x74] sm:$0xf]
        %v203 = vld [vmem:[%s169 + $0x78] sm:$0xf]
        %v204 = vld [vmem:[%s169 + $0x7c] sm:$0xf]
        %v205 = vld [vmem:[%s1] sm:$0xf]
        %v206 = vld [vmem:[%s1 + $0x4] sm:$0xf]
        %v207 = vld [vmem:[%s1 + $0x8] sm:$0xf]
        %v208 = vld [vmem:[%s1 + $0xc] sm:$0xf]
        %v209 = vld [vmem:[%s2] sm:$0x1]
        %v211 = vlaneseq
        %v212 = vshrl.u32 %v211, 7
        %v213 = vsub.s32 0, %v212
        %v214 = vrot.slane %v209, %v213
        %v248 = vunpack.c.l.b16 %v173
        %v249 = vunpack.c.l.b16 %v174
        %v250 = vunpack.c.l.b16 %v175
        %v251 = vunpack.c.l.b16 %v176
        %v252 = vunpack.c.l.b16 %v177
        %v253 = vunpack.c.l.b16 %v178
        %v254 = vunpack.c.l.b16 %v179
        %v255 = vunpack.c.l.b16 %v180
        %v256 = vunpack.c.l.b16 %v181
        %v257 = vunpack.c.l.b16 %v182
        %v258 = vunpack.c.l.b16 %v183
        %v259 = vunpack.c.l.b16 %v184
        %v260 = vunpack.c.l.b16 %v185
        %v261 = vunpack.c.l.b16 %v186
        %v262 = vunpack.c.l.b16 %v187
        %v263 = vunpack.c.l.b16 %v188
        %v264 = vunpack.c.l.b16 %v189
        %v265 = vunpack.c.l.b16 %v190
        %v266 = vunpack.c.l.b16 %v191
        %v267 = vunpack.c.l.b16 %v192
        %v268 = vunpack.c.l.b16 %v193
        %v269 = vunpack.c.l.b16 %v194
        %v270 = vunpack.c.l.b16 %v195
        %v271 = vunpack.c.l.b16 %v196
        %v272 = vunpack.c.l.b16 %v197
        %v273 = vunpack.c.l.b16 %v198
        %v274 = vunpack.c.l.b16 %v199
        %v275 = vunpack.c.l.b16 %v200
        %v276 = vunpack.c.l.b16 %v201
        %v277 = vunpack.c.l.b16 %v202
        %v278 = vunpack.c.l.b16 %v203
        %v279 = vunpack.c.l.b16 %v204
        %v280 = vpack.c.b16 %v249, %v248
        %v281 = vpack.c.b16 %v251, %v250
        %v282 = vpack.c.b16 %v253, %v252
        %v283 = vpack.c.b16 %v255, %v254
        %v284 = vpack.c.b16 %v257, %v256
        %v285 = vpack.c.b16 %v259, %v258
        %v286 = vpack.c.b16 %v261, %v260
        %v287 = vpack.c.b16 %v263, %v262
        %v288 = vpack.c.b16 %v265, %v264
        %v289 = vpack.c.b16 %v267, %v266
        %v290 = vpack.c.b16 %v269, %v268
        %v291 = vpack.c.b16 %v271, %v270
        %v292 = vpack.c.b16 %v273, %v272
        %v293 = vpack.c.b16 %v275, %v274
        %v294 = vpack.c.b16 %v277, %v276
        %v295 = vpack.c.b16 %v279, %v278
        %v300 = vunpack.c.l.b16 %v205
        %v301 = vunpack.c.l.b16 %v206
        %v302 = vunpack.c.l.b16 %v207
        %v303 = vunpack.c.l.b16 %v208
        %v304 = vpack.c.b16 %v301, %v300
        %v305 = vpack.c.b16 %v303, %v302
        %vm308 = vcmask 261120
        %v310 = vsel %vm308, %v280, 0
        %v313 = vsel %vm308, %v281, 0
        %v316 = vsel %vm308, %v282, 0
        %v319 = vsel %vm308, %v283, 0
        %v322 = vsel %vm308, %v284, 0
        %v325 = vsel %vm308, %v285, 0
        %v328 = vsel %vm308, %v286, 0
        %v331 = vsel %vm308, %v287, 0
        %v334 = vsel %vm308, %v288, 0
        %v337 = vsel %vm308, %v289, 0
        %v340 = vsel %vm308, %v290, 0
        %v343 = vsel %vm308, %v291, 0
        %v346 = vsel %vm308, %v292, 0
        %v349 = vsel %vm308, %v293, 0
        %v352 = vsel %vm308, %v294, 0
        %v355 = vsel %vm308, %v295, 0
        %357 = vmatprep.subr.bf16.mxu0 0
        %358 = vmatpush1.bf16.msra.mxu0 %v304
        %359 = vmatprep.subr.bf16.mxu0 0
        %360 = vmatpush1.bf16.msra.mxu0 %v305
        %361 = vmatprep.subr.bf16.mxu0 0
        %362 = vmatpush1.bf16.msra.mxu0 0
        %363 = vmatprep.subr.bf16.mxu0 0
        %364 = vmatpush1.bf16.msra.mxu0 0
        %365 = vmatprep.subr.bf16.mxu0 0
        %366 = vmatpush1.bf16.msra.mxu0 0
        %367 = vmatprep.subr.bf16.mxu0 0
        %368 = vmatpush1.bf16.msra.mxu0 0
        %369 = vmatprep.subr.bf16.mxu0 0
        %370 = vmatpush1.bf16.msra.mxu0 0
        %371 = vmatprep.subr.bf16.mxu0 0
        %372 = vmatpush1.bf16.msra.mxu0 0
        %373 = vmatprep.subr.bf16.mxu0 0
        %374 = vmatpush1.bf16.msra.mxu0 0
        %375 = vmatprep.subr.bf16.mxu0 0
        %376 = vmatpush1.bf16.msra.mxu0 0
        %377 = vmatprep.subr.bf16.mxu0 0
        %378 = vmatpush1.bf16.msra.mxu0 0
        %379 = vmatprep.subr.bf16.mxu0 0
        %380 = vmatpush1.bf16.msra.mxu0 0
        %381 = vmatprep.subr.bf16.mxu0 0
        %382 = vmatpush1.bf16.msra.mxu0 0
        %383 = vmatprep.subr.bf16.mxu0 0
        %384 = vmatpush1.bf16.msra.mxu0 0
        %385 = vmatprep.subr.bf16.mxu0 0
        %386 = vmatpush1.bf16.msra.mxu0 0
        %387 = vmatprep.subr.bf16.mxu0 0
        %388 = vmatpush1.bf16.msra.mxu0 0
        %389 = vmatprep.mubr.bf16.mxu0 0
        %390 = vmatmul.mubr.bf16.gmra.mrb[0].mxu0 %v310
        %v391 = vpop.f32.mrb[0].mxu0
        %v392 = vadd.f32 %v214, %v391
        %v393 = vpop.f32.mrb[0].mxu0
        %v394 = vpop.f32.mrb[0].mxu0
        %v395 = vadd.f32 %v214, %v394
        %v396 = vpop.f32.mrb[0].mxu0
        %397 = vmatprep.mubr.bf16.mxu0 0
        %398 = vmatmul.mubr.bf16.gmra.mrb[0].mxu0 %v313
        %v399 = vpop.f32.mrb[0].mxu0
        %v400 = vadd.f32 %v214, %v399
        %v401 = vpop.f32.mrb[0].mxu0
        %v402 = vpop.f32.mrb[0].mxu0
        %v403 = vadd.f32 %v214, %v402
        %v404 = vpop.f32.mrb[0].mxu0
        %405 = vmatprep.mubr.bf16.mxu0 0
        %406 = vmatmul.mubr.bf16.gmra.mrb[0].mxu0 %v316
        %v407 = vpop.f32.mrb[0].mxu0
        %v408 = vadd.f32 %v214, %v407
        %v409 = vpop.f32.mrb[0].mxu0
        %v410 = vpop.f32.mrb[0].mxu0
        %v411 = vadd.f32 %v214, %v410
        %v412 = vpop.f32.mrb[0].mxu0
        %413 = vmatprep.mubr.bf16.mxu0 0
        %414 = vmatmul.mubr.bf16.gmra.mrb[0].mxu0 %v319
        %v415 = vpop.f32.mrb[0].mxu0
        %v416 = vadd.f32 %v214, %v415
        %v417 = vpop.f32.mrb[0].mxu0
        %v418 = vpop.f32.mrb[0].mxu0
        %v419 = vadd.f32 %v214, %v418
        %v420 = vpop.f32.mrb[0].mxu0
        %421 = vmatprep.mubr.bf16.mxu0 0
        %422 = vmatmul.mubr.bf16.gmra.mrb[0].mxu0 %v322
        %v423 = vpop.f32.mrb[0].mxu0
        %v424 = vadd.f32 %v214, %v423
        %v425 = vpop.f32.mrb[0].mxu0
        %v426 = vpop.f32.mrb[0].mxu0
        %v427 = vadd.f32 %v214, %v426
        %v428 = vpop.f32.mrb[0].mxu0
        %429 = vmatprep.mubr.bf16.mxu0 0
        %430 = vmatmul.mubr.bf16.gmra.mrb[0].mxu0 %v325
        %v431 = vpop.f32.mrb[0].mxu0
        %v432 = vadd.f32 %v214, %v431
        %v433 = vpop.f32.mrb[0].mxu0
        %v434 = vpop.f32.mrb[0].mxu0
        %v435 = vadd.f32 %v214, %v434
        %v436 = vpop.f32.mrb[0].mxu0
        %437 = vmatprep.mubr.bf16.mxu0 0
        %438 = vmatmul.mubr.bf16.gmra.mrb[0].mxu0 %v328
        %v439 = vpop.f32.mrb[0].mxu0
        %v440 = vadd.f32 %v214, %v439
        %v441 = vpop.f32.mrb[0].mxu0
        %v442 = vpop.f32.mrb[0].mxu0
        %v443 = vadd.f32 %v214, %v442
        %v444 = vpop.f32.mrb[0].mxu0
        %445 = vmatprep.mubr.bf16.mxu0 0
        %446 = vmatmul.mubr.bf16.gmra.mrb[0].mxu0 %v331
        %v447 = vpop.f32.mrb[0].mxu0
        %v448 = vadd.f32 %v214, %v447
        %v449 = vpop.f32.mrb[0].mxu0
        %v450 = vpop.f32.mrb[0].mxu0
        %v451 = vadd.f32 %v214, %v450
        %v452 = vpop.f32.mrb[0].mxu0
        %453 = vmatprep.mubr.bf16.mxu0 0
        %454 = vmatmul.mubr.bf16.gmra.mrb[0].mxu0 %v334
        %v455 = vpop.f32.mrb[0].mxu0
        %v456 = vadd.f32 %v214, %v455
        %v457 = vpop.f32.mrb[0].mxu0
        %v458 = vpop.f32.mrb[0].mxu0
        %v459 = vadd.f32 %v214, %v458
        %v460 = vpop.f32.mrb[0].mxu0
        %461 = vmatprep.mubr.bf16.mxu0 0
        %462 = vmatmul.mubr.bf16.gmra.mrb[0].mxu0 %v337
        %v463 = vpop.f32.mrb[0].mxu0
        %v464 = vadd.f32 %v214, %v463
        %v465 = vpop.f32.mrb[0].mxu0
        %v466 = vpop.f32.mrb[0].mxu0
        %v467 = vadd.f32 %v214, %v466
        %v468 = vpop.f32.mrb[0].mxu0
        %469 = vmatprep.mubr.bf16.mxu0 0
        %470 = vmatmul.mubr.bf16.gmra.mrb[0].mxu0 %v340
        %v471 = vpop.f32.mrb[0].mxu0
        %v472 = vadd.f32 %v214, %v471
        %v473 = vpop.f32.mrb[0].mxu0
        %v474 = vpop.f32.mrb[0].mxu0
        %v475 = vadd.f32 %v214, %v474
        %v476 = vpop.f32.mrb[0].mxu0
        %477 = vmatprep.mubr.bf16.mxu0 0
        %478 = vmatmul.mubr.bf16.gmra.mrb[0].mxu0 %v343
        %v479 = vpop.f32.mrb[0].mxu0
        %v480 = vadd.f32 %v214, %v479
        %v481 = vpop.f32.mrb[0].mxu0
        %v482 = vpop.f32.mrb[0].mxu0
        %v483 = vadd.f32 %v214, %v482
        %v484 = vpop.f32.mrb[0].mxu0
        %485 = vmatprep.mubr.bf16.mxu0 0
        %486 = vmatmul.mubr.bf16.gmra.mrb[0].mxu0 %v346
        %v487 = vpop.f32.mrb[0].mxu0
        %v488 = vadd.f32 %v214, %v487
        %v489 = vpop.f32.mrb[0].mxu0
        %v490 = vpop.f32.mrb[0].mxu0
        %v491 = vadd.f32 %v214, %v490
        %v492 = vpop.f32.mrb[0].mxu0
        %493 = vmatprep.mubr.bf16.mxu0 0
        %494 = vmatmul.mubr.bf16.gmra.mrb[0].mxu0 %v349
        %v495 = vpop.f32.mrb[0].mxu0
        %v496 = vadd.f32 %v214, %v495
        %v497 = vpop.f32.mrb[0].mxu0
        %v498 = vpop.f32.mrb[0].mxu0
        %v499 = vadd.f32 %v214, %v498
        %v500 = vpop.f32.mrb[0].mxu0
        %501 = vmatprep.mubr.bf16.mxu0 0
        %502 = vmatmul.mubr.bf16.gmra.mrb[0].mxu0 %v352
        %v503 = vpop.f32.mrb[0].mxu0
        %v504 = vadd.f32 %v214, %v503
        %v505 = vpop.f32.mrb[0].mxu0
        %v506 = vpop.f32.mrb[0].mxu0
        %v507 = vadd.f32 %v214, %v506
        %v508 = vpop.f32.mrb[0].mxu0
        %509 = vmatprep.mubr.bf16.mxu0 0
        %510 = vmatmul.mubr.bf16.gmra.mrb[0].mxu0 %v355
        %v511 = vpop.f32.mrb[0].mxu0
        %v512 = vadd.f32 %v214, %v511
        %v513 = vpop.f32.mrb[0].mxu0
        %v514 = vpop.f32.mrb[0].mxu0
        %v515 = vadd.f32 %v214, %v514
        %v516 = vpop.f32.mrb[0].mxu0
        %517 = vdwg.mxu0
        %v518 = vmax.f32 %v392, 0.0
        %v519 = vmax.f32 %v395, 0.0
        %v520 = vmax.f32 %v400, 0.0
        %v521 = vmax.f32 %v403, 0.0
        %v522 = vmax.f32 %v408, 0.0
        %v523 = vmax.f32 %v411, 0.0
        %v524 = vmax.f32 %v416, 0.0
        %v525 = vmax.f32 %v419, 0.0
        %v526 = vmax.f32 %v424, 0.0
        %v527 = vmax.f32 %v427, 0.0
        %v528 = vmax.f32 %v432, 0.0
        %v529 = vmax.f32 %v435, 0.0
        %v530 = vmax.f32 %v440, 0.0
        %v531 = vmax.f32 %v443, 0.0
        %v532 = vmax.f32 %v448, 0.0
        %v533 = vmax.f32 %v451, 0.0
        %v534 = vmax.f32 %v456, 0.0
        %v535 = vmax.f32 %v459, 0.0
        %v536 = vmax.f32 %v464, 0.0
        %v537 = vmax.f32 %v467, 0.0
        %v538 = vmax.f32 %v472, 0.0
        %v539 = vmax.f32 %v475, 0.0
        %v540 = vmax.f32 %v480, 0.0
        %v541 = vmax.f32 %v483, 0.0
        %v542 = vmax.f32 %v488, 0.0
        %v543 = vmax.f32 %v491, 0.0
        %v544 = vmax.f32 %v496, 0.0
        %v545 = vmax.f32 %v499, 0.0
        %v546 = vmax.f32 %v504, 0.0
        %v547 = vmax.f32 %v507, 0.0
        %v548 = vmax.f32 %v512, 0.0
        %v549 = vmax.f32 %v515, 0.0
        %v550 = vpack.c.bf16 %v519, %v518
        %v551 = vpack.c.bf16 %v521, %v520
        %v552 = vpack.c.bf16 %v523, %v522
        %v553 = vpack.c.bf16 %v525, %v524
        %v554 = vpack.c.bf16 %v527, %v526
        %v555 = vpack.c.bf16 %v529, %v528
        %v556 = vpack.c.bf16 %v531, %v530
        %v557 = vpack.c.bf16 %v533, %v532
        %v558 = vpack.c.bf16 %v535, %v534
        %v559 = vpack.c.bf16 %v537, %v536
        %v560 = vpack.c.bf16 %v539, %v538
        %v561 = vpack.c.bf16 %v541, %v540
        %v562 = vpack.c.bf16 %v543, %v542
        %v563 = vpack.c.bf16 %v545, %v544
        %v564 = vpack.c.bf16 %v547, %v546
        %v565 = vpack.c.bf16 %v549, %v548
        %v582 = vunpack.c.l.b16 %v550
        %v583 = vunpack.c.h.b16 %v550
        %v584 = vunpack.c.l.b16 %v551
        %v585 = vunpack.c.h.b16 %v551
        %v586 = vunpack.c.l.b16 %v552
        %v587 = vunpack.c.h.b16 %v552
        %v588 = vunpack.c.l.b16 %v553
        %v589 = vunpack.c.h.b16 %v553
        %v590 = vunpack.c.l.b16 %v554
        %v591 = vunpack.c.h.b16 %v554
        %v592 = vunpack.c.l.b16 %v555
        %v593 = vunpack.c.h.b16 %v555
        %v594 = vunpack.c.l.b16 %v556
        %v595 = vunpack.c.h.b16 %v556
        %v596 = vunpack.c.l.b16 %v557
        %v597 = vunpack.c.h.b16 %v557
        %v598 = vunpack.c.l.b16 %v558
        %v599 = vunpack.c.h.b16 %v558
        %v600 = vunpack.c.l.b16 %v559
        %v601 = vunpack.c.h.b16 %v559
        %v602 = vunpack.c.l.b16 %v560
        %v603 = vunpack.c.h.b16 %v560
        %v604 = vunpack.c.l.b16 %v561
        %v605 = vunpack.c.h.b16 %v561
        %v606 = vunpack.c.l.b16 %v562
        %v607 = vunpack.c.h.b16 %v562
        %v608 = vunpack.c.l.b16 %v563
        %v609 = vunpack.c.h.b16 %v563
        %v610 = vunpack.c.l.b16 %v564
        %v611 = vunpack.c.h.b16 %v564
        %v612 = vunpack.c.l.b16 %v565
        %v613 = vunpack.c.h.b16 %v565
        %v614 = vpack.c.b16 %v582, %v582
        %v615 = vpack.c.b16 %v583, %v583
        %v616 = vpack.c.b16 %v584, %v584
        %v617 = vpack.c.b16 %v585, %v585
        %v618 = vpack.c.b16 %v586, %v586
        %v619 = vpack.c.b16 %v587, %v587
        %v620 = vpack.c.b16 %v588, %v588
        %v621 = vpack.c.b16 %v589, %v589
        %v622 = vpack.c.b16 %v590, %v590
        %v623 = vpack.c.b16 %v591, %v591
        %v624 = vpack.c.b16 %v592, %v592
        %v625 = vpack.c.b16 %v593, %v593
        %v626 = vpack.c.b16 %v594, %v594
        %v627 = vpack.c.b16 %v595, %v595
        %v628 = vpack.c.b16 %v596, %v596
        %v629 = vpack.c.b16 %v597, %v597
        %v630 = vpack.c.b16 %v598, %v598
        %v631 = vpack.c.b16 %v599, %v599
        %v632 = vpack.c.b16 %v600, %v600
        %v633 = vpack.c.b16 %v601, %v601
        %v634 = vpack.c.b16 %v602, %v602
        %v635 = vpack.c.b16 %v603, %v603
        %v636 = vpack.c.b16 %v604, %v604
        %v637 = vpack.c.b16 %v605, %v605
        %v638 = vpack.c.b16 %v606, %v606
        %v639 = vpack.c.b16 %v607, %v607
        %v640 = vpack.c.b16 %v608, %v608
        %v641 = vpack.c.b16 %v609, %v609
        %v642 = vpack.c.b16 %v610, %v610
        %v643 = vpack.c.b16 %v611, %v611
        %v644 = vpack.c.b16 %v612, %v612
        %v645 = vpack.c.b16 %v613, %v613
        %678 = vst [vmem:[%s164] sm:$0xf] %v614
        %679 = vst [vmem:[%s164 + $0x4] sm:$0xf] %v615
        %680 = vst [vmem:[%s164 + $0x8] sm:$0xf] %v616
        %681 = vst [vmem:[%s164 + $0xc] sm:$0xf] %v617
        %682 = vst [vmem:[%s164 + $0x10] sm:$0xf] %v618
        %683 = vst [vmem:[%s164 + $0x14] sm:$0xf] %v619
        %684 = vst [vmem:[%s164 + $0x18] sm:$0xf] %v620
        %685 = vst [vmem:[%s164 + $0x1c] sm:$0xf] %v621
        %686 = vst [vmem:[%s164 + $0x20] sm:$0xf] %v622
        %687 = vst [vmem:[%s164 + $0x24] sm:$0xf] %v623
        %688 = vst [vmem:[%s164 + $0x28] sm:$0xf] %v624
        %689 = vst [vmem:[%s164 + $0x2c] sm:$0xf] %v625
        %690 = vst [vmem:[%s164 + $0x30] sm:$0xf] %v626
        %691 = vst [vmem:[%s164 + $0x34] sm:$0xf] %v627
        %692 = vst [vmem:[%s164 + $0x38] sm:$0xf] %v628
        %693 = vst [vmem:[%s164 + $0x3c] sm:$0xf] %v629
        %694 = vst [vmem:[%s164 + $0x40] sm:$0xf] %v630
        %695 = vst [vmem:[%s164 + $0x44] sm:$0xf] %v631
        %696 = vst [vmem:[%s164 + $0x48] sm:$0xf] %v632
        %697 = vst [vmem:[%s164 + $0x4c] sm:$0xf] %v633
        %698 = vst [vmem:[%s164 + $0x50] sm:$0xf] %v634
        %699 = vst [vmem:[%s164 + $0x54] sm:$0xf] %v635
        %700 = vst [vmem:[%s164 + $0x58] sm:$0xf] %v636
        %701 = vst [vmem:[%s164 + $0x5c] sm:$0xf] %v637
        %702 = vst [vmem:[%s164 + $0x60] sm:$0xf] %v638
        %703 = vst [vmem:[%s164 + $0x64] sm:$0xf] %v639
        %704 = vst [vmem:[%s164 + $0x68] sm:$0xf] %v640
        %705 = vst [vmem:[%s164 + $0x6c] sm:$0xf] %v641
        %706 = vst [vmem:[%s164 + $0x70] sm:$0xf] %v642
        %707 = vst [vmem:[%s164 + $0x74] sm:$0xf] %v643
        %708 = vst [vmem:[%s164 + $0x78] sm:$0xf] %v644
        %709 = vst [vmem:[%s164 + $0x7c] sm:$0xf] %v645
        %s710 = sand.u32 %s93, 1
        %s711 = scalar_lea.sflag [#allocation3], %s710
        %s712 = sand.u32 %s93, 1
        %s713 = smul.addr %s712, 128
        %s714 = scalar_lea.vmem [#allocation2], %s713
        // Predicated region
        $region33: #{tpu_custom_call.1} parent=31 // pred_check
          %p715 = pneg %p103
        $region34: #{tpu_custom_call.1} parent=31 // pred_check_branch
          %717 = sbr.rel (%p715) target = $region36
        $region35: #{tpu_custom_call.1} parent=31 // pred_region
          %s718 = smul.u32 32, %s17
          %s720 = ssub.s32 2048, 2048
          %721 = vsyncadd %s711, %s720
          %s722 = smul.addr %s718, 64
          %s723 = scalar_lea.hbm %s3, %s722
          %s724 = sshll.u32 %s714, 4
          %s725 = int_to_ptr.vmem [resolvable:$true] %s724
          %730 = dma.vmem_to_hbm [thread:$0]  %s725, 2048, %s723, %s711, 64, 64, 4
        $region36: #{tpu_custom_call.1} parent=31 // pred_fallthru
          _
      $region32: #{tpu_custom_call.1} parent=5 // pred_fallthru
        _
      %p731 = scmp.le.s32.totalorder 2, %s12
      // Predicated region
      $region37: #{tpu_custom_call.1} parent=5 // pred_check
        %p732 = pneg %p731
      $region38: #{tpu_custom_call.1} parent=5 // pred_check_branch
        %734 = sbr.rel (%p732) target = $region40
      $region39: #{tpu_custom_call.1} parent=5 // pred_region
        %s735 = ssub.s32 %s12, 2
        // Predicated region
        $region41: #{tpu_custom_call.1} parent=39 // pred_check
          %p736 = pneg %p109
        $region42: #{tpu_custom_call.1} parent=39 // pred_check_branch
          %738 = sbr.rel (%p736) target = $region44
        $region43: #{tpu_custom_call.1} parent=39 // pred_region
          %s739 = sand.u32 %s94, 1
          %s740 = scalar_lea.sflag [#allocation3], %s739
          %s741 = sand.u32 %s94, 1
          %s742 = smul.addr %s741, 128
          %s743 = scalar_lea.vmem [#allocation2], %s742
          %744 = dma.done %s740, 2048
        $region44: #{tpu_custom_call.1} parent=39 // pred_fallthru
          _
      $region40: #{tpu_custom_call.1} parent=5 // pred_fallthru
        _
    $region6: #{tpu_custom_call.1} parent=1 // loop_footer
      %s16 = sadd.s32 1, %s12
    $region7: #{tpu_custom_call.1} parent=1 // loop_footer_branch
      %11 = sbr.rel target = $region3
    $region8: #{tpu_custom_call.1} parent=1 // loop_exit
      _
    %745 = vsyncpa [#allocation3], 1
    %s746 = scalar_lea.sflag [#allocation3], 1
    %747 = vsyncpa %s746, 1

</llo_original>
